<compile_context>
chip_gen: v6e
topology: v6e:2x2x1
jax: 0.10.0
libtpu: 0.0.40
codegen_flags: <defaults>
</compile_context>

<pallas_src>
import functools

import jax
import jax.numpy as jnp
from jax.experimental import pallas as pl
from jax.experimental.pallas import tpu as pltpu


# ----------------------------------------------------------------------------
# Kernels
# ----------------------------------------------------------------------------
def _rowsum_kernel(x_ref, y_ref, o_ref, *, op):
    """mse / mae partials: per-row sum of (x-y)^2 or |x-y| -> [tile_rows, 1].

    Purely per-row: padded tail rows produce garbage that Pallas masks on the
    (partial) last output block writeback, so no explicit mask is needed.
    """
    x = x_ref[...].astype(jnp.float32)
    y = y_ref[...].astype(jnp.float32)
    d = x - y
    v = d * d if op == "mse" else jnp.abs(d)
    o_ref[...] = jnp.sum(v, axis=-1, keepdims=True)


def _cosine_kernel(x_ref, y_ref, o_ref, *, eps):
    """1 - cosine_similarity per row (torch.nn.CosineSimilarity semantics)."""
    x = x_ref[...].astype(jnp.float32)
    y = y_ref[...].astype(jnp.float32)
    dot = jnp.sum(x * y, axis=-1, keepdims=True)       # [tile_rows, 1]
    nx2 = jnp.sum(x * x, axis=-1, keepdims=True)
    ny2 = jnp.sum(y * y, axis=-1, keepdims=True)
    # torch: dot / max(||x|| * ||y||, eps)
    #   1 / max(sqrt(p), eps) == min(rsqrt(p), 1/eps)   (rsqrt runs on the EUP)
    # Note: rsqrt(nx2*ny2) can over/underflow f32 for extreme-magnitude rows;
    # fine for normalized CLIP embeddings.
    inv_denom = jnp.minimum(jax.lax.rsqrt(nx2 * ny2), 1.0 / eps)
    o_ref[...] = 1.0 - dot * inv_denom


# ----------------------------------------------------------------------------
# Tiling helpers
# ----------------------------------------------------------------------------
def _sublane_multiple(itemsize):
    """Native sublane packing for the dtype width (vreg sublane tiling)."""
    return {1: 32, 2: 16, 4: 8}.get(int(itemsize), 8)


def _per_row_vmem_bytes(D, itemsize):
    """VMEM bytes per block row:
    2 inputs x 2 pipeline buffers at native dtype + ~4 f32-width temporaries
    (x, y, d, v upcasts) the compiler may materialize."""
    return 4 * D * itemsize + 4 * D * 4


def _pick_tile_rows(B, D, itemsize):
    """Largest sublane-aligned tile whose footprint fits a ~40 MiB budget
    (binding case: v7x = 64 MiB physical / 32 MiB scoped default VMEM)."""
    budget_bytes = 40 * 1024 * 1024
    rows = budget_bytes // max(1, _per_row_vmem_bytes(D, itemsize))
    rows = int(max(8, min(rows, 8192)))
    if rows >= B:
        return B                          # single full-extent block
    m = _sublane_multiple(itemsize)
    return max(m, (rows // m) * m)


def _vmem_limit_bytes(tile_rows, D, itemsize):
    """Explicit scoped-VMEM limit sized to the footprint, clamped to 48 MiB
    so it always fits v7x's 64 MiB physical VMEM."""
    footprint = tile_rows * _per_row_vmem_bytes(D, itemsize)
    return int(min(max(footprint + (4 << 20), 32 << 20), 48 << 20))


# ----------------------------------------------------------------------------
# Pure-JAX reference (torch-matching) — also the small-shape fast path.
# ----------------------------------------------------------------------------
def _ref(x, y, loss_type):
    xf = x.astype(jnp.float32)
    yf = y.astype(jnp.float32)
    if loss_type == "mse":
        return jnp.mean((xf - yf) ** 2)
    if loss_type == "mae":
        return jnp.mean(jnp.abs(xf - yf))
    if loss_type == "cosine":
        eps = 1e-8
        dot = jnp.sum(xf * yf, axis=-1)
        denom = jnp.maximum(
            jnp.linalg.norm(xf, axis=-1) * jnp.linalg.norm(yf, axis=-1), eps)
        return 1.0 - dot / denom
    raise ValueError(f"unknown loss_type: {loss_type}")


# ----------------------------------------------------------------------------
# Wrapper
# ----------------------------------------------------------------------------
def direction_loss(x, y, loss_type="mse", *, tile_rows=None, use_pallas=None):
    """Pallas implementation of NeRF-Art DirectionLoss.forward(x, y)."""
    assert x.shape == y.shape and x.ndim == 2, "expected [B, D] inputs"
    B, D = x.shape
    itemsize = max(jnp.dtype(x.dtype).itemsize, jnp.dtype(y.dtype).itemsize)

    if use_pallas is None:
        # CLIP-embedding-sized problems (<1 MiB per input) are dominated by
        # kernel-launch + padded-DMA overhead; staying in XLA lets the loss
        # fuse with surrounding ops.
        use_pallas = (B * D * itemsize) >= (1 << 20)
    if not use_pallas:
        return _ref(x, y, loss_type)

    if tile_rows is None:
        tile_rows = _pick_tile_rows(B, D, itemsize)
    else:
        tile_rows = int(min(tile_rows, B))
        if tile_rows != B:
            m = _sublane_multiple(itemsize)           # dtype-aware alignment
            tile_rows = max(m, (tile_rows // m) * m)

    n_tiles = pl.cdiv(B, tile_rows)
    vmem_limit = _vmem_limit_bytes(tile_rows, D, itemsize)

    in_specs = [
        pl.BlockSpec((tile_rows, D), lambda i: (i, 0)),
        pl.BlockSpec((tile_rows, D), lambda i: (i, 0)),
    ]
    out_spec = pl.BlockSpec((tile_rows, 1), lambda i: (i, 0))
    compiler_params = pltpu.CompilerParams(
        dimension_semantics=("parallel",),            # megacore-shardable
        vmem_limit_bytes=vmem_limit,
    )

    if loss_type in ("mse", "mae"):
        kernel = functools.partial(_rowsum_kernel, op=loss_type)
        per_row = pl.pallas_call(
            kernel,
            out_shape=jax.ShapeDtypeStruct((B, 1), jnp.float32),
            grid=(n_tiles,),
            in_specs=in_specs,
            out_specs=out_spec,
            compiler_params=compiler_params,
            cost_estimate=pl.CostEstimate(
                flops=3 * B * D, transcendentals=0,
                bytes_accessed=2 * B * D * itemsize + 4 * B),
        )(x, y)
        # Final (tiny) reduction + mean scale in XLA; static Python literal.
        inv_n = 1.0 / float(B * D)
        return jnp.sum(per_row) * inv_n   # scalar, matches torch {MSE,L1}Loss

    if loss_type == "cosine":
        kernel = functools.partial(_cosine_kernel, eps=1e-8)  # static float
        out = pl.pallas_call(
            kernel,
            out_shape=jax.ShapeDtypeStruct((B, 1), jnp.float32),
            grid=(n_tiles,),
            in_specs=in_specs,
            out_specs=out_spec,
            compiler_params=compiler_params,
            cost_estimate=pl.CostEstimate(
                flops=7 * B * D, transcendentals=B,
                bytes_accessed=2 * B * D * itemsize + 4 * B),
        )(x, y)
        return out[:, 0]  # [B], matches 1 - torch.nn.CosineSimilarity(dim=1)

    raise ValueError(f"unknown loss_type: {loss_type}")


# ----------------------------------------------------------------------------
# Test
# ----------------------------------------------------------------------------
if __name__ == "__main__":
    ok = True

    def check(x, y, lt, tol, tile_rows=None, use_pallas=True):
        global ok
        out = jax.block_until_ready(
            direction_loss(x, y, loss_type=lt, tile_rows=tile_rows,
                           use_pallas=use_pallas))
        ref = _ref(x, y, lt)
        if not jnp.allclose(out, ref, atol=tol, rtol=tol):
            ok = False
            print(f"MISMATCH {lt} dtype={x.dtype} tile={tile_rows}: {out} vs {ref}")

    # CLIP-embedding-like small shapes, f32 and native bf16 (kernel forced on).
    kx, ky = jax.random.split(jax.random.PRNGKey(0))
    B, D = 2, 512
    xf = jax.random.normal(kx, (B, D), dtype=jnp.float32)
    yf = jax.random.normal(ky, (B, D), dtype=jnp.float32)
    xb = xf.astype(jnp.bfloat16)
    yb = yf.astype(jnp.bfloat16)
    for lt in ("mse", "mae", "cosine"):
        check(xf, yf, lt, 1e-5)                       # Pallas kernel, f32
        check(xb, yb, lt, 1e-4)                       # Pallas kernel, bf16
        check(xf, yf, lt, 1e-6, use_pallas=None)      # auto-dispatch fast path

    # Multi-tile parallel grid + tail-block handling.
    #   f32: 8-row tiles; bf16: explicit 8 rounds up to 16 (sublane packing).
    kx2, ky2 = jax.random.split(jax.random.PRNGKey(1))
    B2, D2 = 37, 256
    x2 = jax.random.normal(kx2, (B2, D2), dtype=jnp.float32)
    y2 = jax.random.normal(ky2, (B2, D2), dtype=jnp.float32)
    x2b = x2.astype(jnp.bfloat16)
    y2b = y2.astype(jnp.bfloat16)
    for lt in ("mse", "mae", "cosine"):
        check(x2, y2, lt, 1e-5, tile_rows=8)
        check(x2b, y2b, lt, 1e-4, tile_rows=8)

    if ok:
        print("KERNEL_OK")
</pallas_src>

<mosaic_0001>
module attributes {stable_mosaic.version = 11 : i64} {
  func.func @_rowsum_kernel(%arg0: i32, %arg1: memref<2x512xf32, #tpu.memory_space<vmem>>, %arg2: memref<2x512xf32, #tpu.memory_space<vmem>>, %arg3: memref<2x1xf32, #tpu.memory_space<vmem>>) attributes {dimension_semantics = [#tpu.dimension_semantics<parallel>], iteration_bounds = array<i64: 1>, scalar_prefetch = 0 : i64, scratch_operands = 0 : i64, tpu.core_type = #tpu.core_type<tc>, window_params = [{transform_indices = @transform_0, window_bounds = array<i64: 2, 512>}, {transform_indices = @transform_1, window_bounds = array<i64: 2, 512>}, {transform_indices = @transform_2, window_bounds = array<i64: 2, 1>}]} {
    %c0 = arith.constant 0 : index
    %c0_0 = arith.constant 0 : index
    %0 = vector.load %arg1[%c0, %c0_0] : memref<2x512xf32, #tpu.memory_space<vmem>>, vector<2x512xf32>
    %c0_1 = arith.constant 0 : index
    %c0_2 = arith.constant 0 : index
    %1 = vector.load %arg2[%c0_1, %c0_2] : memref<2x512xf32, #tpu.memory_space<vmem>>, vector<2x512xf32>
    %2 = arith.subf %0, %1 : vector<2x512xf32>
    %3 = arith.mulf %2, %2 : vector<2x512xf32>
    %cst = arith.constant dense<0.000000e+00> : vector<2xf32>
    %4 = vector.multi_reduction <add>, %3, %cst [1] : vector<2x512xf32> to vector<2xf32>
    %5 = vector.shape_cast %4 : vector<2xf32> to vector<2x1xf32>
    %c0_3 = arith.constant 0 : index
    %c0_4 = arith.constant 0 : index
    %6 = vector.load %arg3[%c0_3, %c0_4] : memref<2x1xf32, #tpu.memory_space<vmem>>, vector<2x1xf32>
    tpu.vector_store %arg3[%c0_3, %c0_4], %5 {strides = array<i32>} : memref<2x1xf32, #tpu.memory_space<vmem>>, vector<2x1xf32>,
    return
  }
  func.func @transform_0(%arg0: i32) -> (i32, i32) {
    %c0_i32 = arith.constant 0 : i32
    %c0_i32_0 = arith.constant 0 : i32
    return %arg0, %c0_i32 : i32, i32
  }
  func.func @transform_1(%arg0: i32) -> (i32, i32) {
    %c0_i32 = arith.constant 0 : i32
    %c0_i32_0 = arith.constant 0 : i32
    return %arg0, %c0_i32 : i32, i32
  }
  func.func @transform_2(%arg0: i32) -> (i32, i32) {
    %c0_i32 = arith.constant 0 : i32
    %c0_i32_0 = arith.constant 0 : i32
    return %arg0, %c0_i32 : i32, i32
  }
}

</mosaic_0001>

<llo_original>
// kernel: tpu_custom_call.1
$region0: #{tpu_custom_call.1}
  #allocation0 [shape = 'u32[]', space=smem, size = 0x4, offset = 0x4, fixed_abs, tag = 'smem constant byte address 0x4 - core index']
  #allocation1 [shape = 'u32[144,128]{1,0:T(1,128)}', space=vmem, size = 0x12000, scoped, tag = 'internal scratch']
  %s0 = inlined_call_operand.hbm [shape: f32[2,512], index: 0, kind: input, shape index: {}]
  %s1 = inlined_call_operand.hbm [shape: f32[2,512], index: 1, kind: input, shape index: {}]
  %s2 = inlined_call_operand.vmem [shape: f32[2,1], index: 2, kind: output, shape index: {}]
  %s3 = sld [smem:[#allocation0]]
  $region26: #{tpu_custom_call.1} parent=0
    _
  %s5 = ssub.s32 1, %s3
  %s6 = scalar_select 0, %s5, %s3
  $region1: #{tpu_custom_call.1} parent=0
    #allocation2 [shape = 'u8[4096]{0}', space=vmem, size = 0x1000, scoped, tag = 'input window, operand 0, single buffered']
    #allocation3 [shape = 's32[1]{0}', space=sflag, size = 0x4, scoped, tag = 'scoped memory for tpu_custom_call.1']
    #allocation4 [shape = 'u8[4096]{0}', space=vmem, size = 0x1000, scoped, tag = 'input window, operand 1, single buffered']
    #allocation5 [shape = 's32[1]{0}', space=sflag, size = 0x4, scoped, tag = 'scoped memory for tpu_custom_call.1']
    %7 = vsyncpa [#allocation3], 0
    %8 = vsyncpa [#allocation5], 0
    // Predicated region
    $region2: #{tpu_custom_call.1} parent=1 // pred_check
      _
    $region3: #{tpu_custom_call.1} parent=1 // pred_check_branch
      %10 = sbr.rel (0) target = $region5
    $region4: #{tpu_custom_call.1} parent=1 // pred_region
      %s12 = ssub.s32 128, 128
      %13 = vsyncadd [#allocation3], %s12
      %s15 = sshll.u32 [#allocation2], 4
      %s16 = int_to_ptr.vmem [resolvable:$true] %s15
      %18 = dma.hbm_to_vmem [thread:$0]  %s0, 128, %s16, [#allocation3]
    $region5: #{tpu_custom_call.1} parent=1 // pred_fallthru
      _
    // Predicated region
    $region6: #{tpu_custom_call.1} parent=1 // pred_check
      _
    $region7: #{tpu_custom_call.1} parent=1 // pred_check_branch
      %20 = sbr.rel (0) target = $region9
    $region8: #{tpu_custom_call.1} parent=1 // pred_region
      %s22 = ssub.s32 128, 128
      %23 = vsyncadd [#allocation5], %s22
      %s25 = sshll.u32 [#allocation4], 4
      %s26 = int_to_ptr.vmem [resolvable:$true] %s25
      %28 = dma.hbm_to_vmem [thread:$0]  %s1, 128, %s26, [#allocation5]
    $region9: #{tpu_custom_call.1} parent=1 // pred_fallthru
      _
    // Predicated region
    $region10: #{tpu_custom_call.1} parent=1 // pred_check
      _
    $region11: #{tpu_custom_call.1} parent=1 // pred_check_branch
      %30 = sbr.rel (0) target = $region13
    $region12: #{tpu_custom_call.1} parent=1 // pred_region
      %31 = dma.done [#allocation3], 128
    $region13: #{tpu_custom_call.1} parent=1 // pred_fallthru
      _
    // Predicated region
    $region14: #{tpu_custom_call.1} parent=1 // pred_check
      _
    $region15: #{tpu_custom_call.1} parent=1 // pred_check_branch
      %33 = sbr.rel (0) target = $region17
    $region16: #{tpu_custom_call.1} parent=1 // pred_region
      %34 = dma.done [#allocation5], 128
    $region17: #{tpu_custom_call.1} parent=1 // pred_fallthru
      _
    %v35 = vld [vmem:[#allocation2] sm:$0xff]
    %v36 = vld [vmem:[#allocation4] sm:$0xff]
    %v37 = vsub.f32 %v35, %v36
    %v38 = vmul.f32 %v37, %v37
    %v40 = vcombine.high %v38, %v38
    %v42 = vunpack.c.l.s4 1983009808
    %v43 = vunpack.c.0.s8 %v42
    %v44 = vlaneseq
    %v45 = vshrl.u32 %v44, 7
    %v46 = vsub.s32 %v43, %v45
    %v47 = vrot.slane %v38, %v46
    %v49 = vunpack.c.l.s4 1983009808
    %v50 = vunpack.c.0.s8 %v49
    %v51 = vlaneseq
    %v52 = vshrl.u32 %v51, 7
    %v53 = vsub.s32 %v50, %v52
    %v54 = vrot.slane %v40, %v53
    %v55 = vcombine.high %v47, %v47
    %v56 = vcombine.high %v54, %v54
    %vm61 = vcmask 1041408
    %v62 = vsel %vm61, %v47, 0.0
    %v63 = vsel %vm61, %v55, 0.0
    %v64 = vadd.f32 %v62, %v63
    %v65 = vsel %vm61, %v54, 0.0
    %v66 = vadd.f32 %v64, %v65
    %v67 = vsel %vm61, %v56, 0.0
    %v68 = vadd.f32 %v66, %v67
    %69 = vadd.xlane.f32.xlu0 %v68
    %v70 = vpop.xlane.xlu0 %69
    %vm71 = vcmask 1024
    %72 = vst.msk [vmem:[%s2] sm:$0x3] %vm71, %v70
    // Predicated region
    $region18: #{tpu_custom_call.1} parent=1 // pred_check
      _
    $region19: #{tpu_custom_call.1} parent=1 // pred_check_branch
      %74 = sbr.rel (0) target = $region21
    $region20: #{tpu_custom_call.1} parent=1 // pred_region
      _
    $region21: #{tpu_custom_call.1} parent=1 // pred_fallthru
      _
    // Predicated region
    $region22: #{tpu_custom_call.1} parent=1 // pred_check
      _
    $region23: #{tpu_custom_call.1} parent=1 // pred_check_branch
      %76 = sbr.rel (0) target = $region25
    $region24: #{tpu_custom_call.1} parent=1 // pred_region
      _
    $region25: #{tpu_custom_call.1} parent=1 // pred_fallthru
      _
    %77 = vsyncpa [#allocation3], 1
    %78 = vsyncpa [#allocation5], 1

</llo_original>
